<compile_context>
chip_gen: v7x
topology: tpu7x:2x2x1
jax: 0.10.0
libtpu: 0.0.40
codegen_flags: <defaults>
</compile_context>

<pallas_src>
import math
import functools

import jax
import jax.numpy as jnp
from jax.experimental import pallas as pl
from jax.experimental.pallas import tpu as pltpu

_INV_SQRT2 = 1.0 / math.sqrt(2.0)


def mlp_kernel(x_ref, w1_ref, b1_ref, w2_ref, b2_ref, o_ref, acc_ref):
    """One (M-tile, H-chunk) grid step of the fused MLP.

    grid = (num_m_tiles, num_h_chunks); axis 1 is a reduction into acc_ref.
    """
    k = pl.program_id(1)

    @pl.when(k == 0)
    def _():
        # Seed the f32 accumulator with the c_proj bias (broadcast over rows);
        # finalize then only needs a cast + store.
        acc_ref[...] = jnp.broadcast_to(b2_ref[...], acc_ref.shape)

    x = x_ref[...]        # [TM, E]   (f32 or bf16)
    w1 = w1_ref[...]      # [E,  TH]
    b1 = b1_ref[...]      # [1,  TH]  (f32)
    w2 = w2_ref[...]      # [TH, E]

    # c_fc chunk: MXU matmul, f32 accumulation; bias add in f32 on the VPU.
    h = jnp.dot(x, w1, preferred_element_type=jnp.float32) + b1

    # exact (erf) GELU in f32 -- matches torch.nn.GELU(approximate='none').
    # erf goes to the EUP slot, so it overlaps with the MXU work.
    g = 0.5 * h * (1.0 + jax.lax.erf(h * _INV_SQRT2))

    # c_proj chunk: accumulate into the persistent f32 VMEM scratch.
    acc_ref[...] += jnp.dot(g.astype(w2.dtype), w2,
                            preferred_element_type=jnp.float32)

    @pl.when(k == pl.num_programs(1) - 1)
    def _():
        # dropout with p = 0.0 (eval) is the identity.
        o_ref[...] = acc_ref[...].astype(o_ref.dtype)


def _pick_h_chunk(H, cap):
    """Largest multiple of 128 that divides H and is <= cap; else H itself.

    Guarantees (a) no padded weight chunks enter the reduction and (b) the
    last-dim / second-last-dim BlockSpec tiling constraints are satisfied.
    """
    if H <= cap:
        return H
    th = (cap // 128) * 128
    while th >= 128:
        if H % th == 0:
            return th
        th -= 128
    return H


@functools.partial(jax.jit, static_argnames=("block_m", "block_h"))
def mlp_forward(x, w1, b1, w2, b2, *, block_m=512, block_h=512):
    """x: [B, T, E] -> [B, T, E].  Fused c_fc -> GELU -> c_proj (dropout p=0)."""
    B, T, E = x.shape
    H = w1.shape[1]  # 4 * E
    M = B * T

    x2d = x.reshape(M, E)
    # Biases always in f32 so the elementwise path (bias add + GELU) stays f32
    # even when x / weights are bf16 (v5e VPU/EUP has no bf16 path).
    b1_2d = b1.reshape(1, H).astype(jnp.float32)
    b2_2d = b2.reshape(1, E).astype(jnp.float32)

    tm = min(block_m, M)
    th = _pick_h_chunk(H, block_h)
    grid = (pl.cdiv(M, tm), pl.cdiv(H, th))

    out_dtype = x.dtype
    flops = 4 * M * E * H  # two matmuls, 2*M*E*H each
    bytes_accessed = int(
        x2d.size * x2d.dtype.itemsize
        + w1.size * w1.dtype.itemsize
        + w2.size * w2.dtype.itemsize
        + b1_2d.size * 4
        + b2_2d.size * 4
        + M * E * jnp.dtype(out_dtype).itemsize
    )

    out2d = pl.pallas_call(
        mlp_kernel,
        out_shape=jax.ShapeDtypeStruct((M, E), out_dtype),
        grid=grid,
        in_specs=[
            pl.BlockSpec((tm, E), lambda i, k: (i, 0)),   # x tile (resident across k)
            pl.BlockSpec((E, th), lambda i, k: (0, k)),   # W1 H-chunk
            pl.BlockSpec((1, th), lambda i, k: (0, k)),   # b1 H-chunk
            pl.BlockSpec((th, E), lambda i, k: (k, 0)),   # W2 H-chunk
            pl.BlockSpec((1, E),  lambda i, k: (0, 0)),   # b2 (grid-invariant)
        ],
        out_specs=pl.BlockSpec((tm, E), lambda i, k: (i, 0)),
        scratch_shapes=[pltpu.VMEM((tm, E), jnp.float32)],
        compiler_params=pltpu.CompilerParams(
            dimension_semantics=("parallel", "arbitrary"),
            vmem_limit_bytes=64 * 1024 * 1024,
        ),
        cost_estimate=pl.CostEstimate(
            flops=int(flops),
            transcendentals=int(M * H),
            bytes_accessed=bytes_accessed,
        ),
    )(x2d, w1, b1_2d, w2, b2_2d)

    return out2d.reshape(B, T, E)


def mlp_reference(x, w1, b1, w2, b2):
    """Plain-JAX f32 reference (exact erf GELU)."""
    B, T, E = x.shape
    xf = x.astype(jnp.float32).reshape(-1, E)
    h = xf @ w1.astype(jnp.float32) + b1.astype(jnp.float32)
    g = 0.5 * h * (1.0 + jax.lax.erf(h * _INV_SQRT2))
    out = g @ w2.astype(jnp.float32) + b2.astype(jnp.float32)
    return out.reshape(B, T, E)


def init_params(key, encoder_size, dtype=jnp.float32):
    """nn.Linear-style init (uniform +/- 1/sqrt(fan_in)); weights stored [in, out]."""
    E = encoder_size
    H = 4 * E
    k1, k2, k3, k4 = jax.random.split(key, 4)

    bound1 = 1.0 / math.sqrt(E)
    w1 = jax.random.uniform(k1, (E, H), dtype, minval=-bound1, maxval=bound1)
    b1 = jax.random.uniform(k2, (H,), dtype, minval=-bound1, maxval=bound1)

    bound2 = 1.0 / math.sqrt(H)
    w2 = jax.random.uniform(k3, (H, E), dtype, minval=-bound2, maxval=bound2)
    b2 = jax.random.uniform(k4, (E,), dtype, minval=-bound2, maxval=bound2)

    return w1, b1, w2, b2


if __name__ == "__main__":
    # args.encoder_size = 32, args.bias = True, args.dropout = 0.0
    key = jax.random.PRNGKey(0)
    kx, kp, kx2 = jax.random.split(key, 3)

    # --- check 1: small demo shape, f32, single grid step -------------------
    B, T, E = 2, 8, 32
    x = jax.random.normal(kx, (B, T, E), dtype=jnp.float32)
    w1, b1, w2, b2 = init_params(kp, E)

    out = jax.block_until_ready(mlp_forward(x, w1, b1, w2, b2))
    ref = mlp_reference(x, w1, b1, w2, b2)
    assert out.shape == (B, T, E)
    assert jnp.allclose(out, ref, atol=1e-5, rtol=1e-5), "f32 mismatch vs reference"

    # --- check 2: larger M + H chunking (exercises M tiling + accumulator) ---
    B2, T2 = 4, 192                       # M = 768 -> 2 M-tiles at block_m=512
    x2 = jax.random.normal(kx2, (B2, T2, E), dtype=jnp.float32)
    # H = 128 with block_h=128 -> single chunk; also check multi-chunk via th=H
    out2 = jax.block_until_ready(
        mlp_forward(x2, w1, b1, w2, b2, block_m=512, block_h=128))
    ref2 = mlp_reference(x2, w1, b1, w2, b2)
    assert jnp.allclose(out2, ref2, atol=1e-5, rtol=1e-5), "tiled f32 mismatch"

    # --- check 3: bf16 matmul inputs, f32 accumulation ------------------------
    out_bf = jax.block_until_ready(
        mlp_forward(x.astype(jnp.bfloat16),
                    w1.astype(jnp.bfloat16), b1,
                    w2.astype(jnp.bfloat16), b2))
    ref_bf = mlp_reference(x.astype(jnp.bfloat16),
                           w1.astype(jnp.bfloat16), b1,
                           w2.astype(jnp.bfloat16), b2)
    assert jnp.allclose(out_bf.astype(jnp.float32), ref_bf,
                        atol=3e-2, rtol=3e-2), "bf16 mismatch vs reference"

    print("KERNEL_OK")
</pallas_src>

<mosaic_0001>
module attributes {stable_mosaic.version = 11 : i64} {
  func.func @mlp_kernel(%arg0: i32, %arg1: i32, %arg2: memref<16x32xf32, #tpu.memory_space<vmem>>, %arg3: memref<32x128xf32, #tpu.memory_space<vmem>>, %arg4: memref<1x128xf32, #tpu.memory_space<vmem>>, %arg5: memref<128x32xf32, #tpu.memory_space<vmem>>, %arg6: memref<1x32xf32, #tpu.memory_space<vmem>>, %arg7: memref<16x32xf32, #tpu.memory_space<vmem>>, %arg8: memref<16x32xf32, #tpu.memory_space<vmem>>) attributes {dimension_semantics = [#tpu.dimension_semantics<parallel>, #tpu.dimension_semantics<arbitrary>], iteration_bounds = array<i64: 1, 1>, scalar_prefetch = 0 : i64, scratch_operands = 1 : i64, tpu.core_type = #tpu.core_type<tc>, window_params = [{transform_indices = @transform_0, window_bounds = array<i64: 16, 32>}, {transform_indices = @transform_1, window_bounds = array<i64: 32, 128>}, {transform_indices = @transform_2, window_bounds = array<i64: 1, 128>}, {transform_indices = @transform_3, window_bounds = array<i64: 128, 32>}, {pipeline_mode = #tpu.pipeline_mode<synchronous>, transform_indices = @transform_4, window_bounds = array<i64: 1, 32>}, {transform_indices = @transform_5, window_bounds = array<i64: 16, 32>}]} {
    %c0_i32 = arith.constant 0 : i32
    %0 = arith.cmpi eq, %arg1, %c0_i32 : i32
    %1 = arith.extui %0 : i1 to i32
    %c0_i32_0 = arith.constant 0 : i32
    %2 = arith.cmpi ne, %1, %c0_i32_0 : i32
    scf.if %2 {
      %c0_18 = arith.constant 0 : index
      %c0_19 = arith.constant 0 : index
      %25 = vector.load %arg6[%c0_18, %c0_19] : memref<1x32xf32, #tpu.memory_space<vmem>>, vector<1x32xf32>
      %26 = vector.shape_cast %25 : vector<1x32xf32> to vector<1x32xf32>
      %27 = vector.broadcast %26 : vector<1x32xf32> to vector<16x32xf32>
      %c0_20 = arith.constant 0 : index
      %c0_21 = arith.constant 0 : index
      %28 = vector.load %arg8[%c0_20, %c0_21] : memref<16x32xf32, #tpu.memory_space<vmem>>, vector<16x32xf32>
      tpu.vector_store %arg8[%c0_20, %c0_21], %27 {strides = array<i32>} : memref<16x32xf32, #tpu.memory_space<vmem>>, vector<16x32xf32>,
    } else {
    }
    %c0 = arith.constant 0 : index
    %c0_1 = arith.constant 0 : index
    %3 = vector.load %arg2[%c0, %c0_1] : memref<16x32xf32, #tpu.memory_space<vmem>>, vector<16x32xf32>
    %c0_2 = arith.constant 0 : index
    %c0_3 = arith.constant 0 : index
    %4 = vector.load %arg3[%c0_2, %c0_3] : memref<32x128xf32, #tpu.memory_space<vmem>>, vector<32x128xf32>
    %c0_4 = arith.constant 0 : index
    %c0_5 = arith.constant 0 : index
    %5 = vector.load %arg4[%c0_4, %c0_5] : memref<1x128xf32, #tpu.memory_space<vmem>>, vector<1x128xf32>
    %c0_6 = arith.constant 0 : index
    %c0_7 = arith.constant 0 : index
    %6 = vector.load %arg5[%c0_6, %c0_7] : memref<128x32xf32, #tpu.memory_space<vmem>>, vector<128x32xf32>
    %cst = arith.constant dense<0.000000e+00> : vector<16x128xf32>
    %7 = tpu.matmul %3, %4, %cst {dimension_numbers = #tpu.dot_dimension_numbers<[1], [0], [0], [1], [0, 0, 1, 1], [], []>} : vector<16x32xf32>, vector<32x128xf32>, vector<16x128xf32> -> vector<16x128xf32>
    %8 = vector.broadcast %5 : vector<1x128xf32> to vector<16x128xf32>
    %9 = arith.addf %7, %8 : vector<16x128xf32>
    %cst_8 = arith.constant 5.000000e-01 : f32
    %10 = vector.broadcast %cst_8 : f32 to vector<16x128xf32>
    %11 = arith.mulf %10, %9 : vector<16x128xf32>
    %cst_9 = arith.constant 0.707106769 : f32
    %12 = vector.broadcast %cst_9 : f32 to vector<16x128xf32>
    %13 = arith.mulf %9, %12 : vector<16x128xf32>
    %14 = math.erf %13 : vector<16x128xf32>
    %cst_10 = arith.constant 1.000000e+00 : f32
    %15 = vector.broadcast %cst_10 : f32 to vector<16x128xf32>
    %16 = arith.addf %15, %14 : vector<16x128xf32>
    %17 = arith.mulf %11, %16 : vector<16x128xf32>
    %c0_11 = arith.constant 0 : index
    %c0_12 = arith.constant 0 : index
    %18 = vector.load %arg8[%c0_11, %c0_12] : memref<16x32xf32, #tpu.memory_space<vmem>>, vector<16x32xf32>
    %cst_13 = arith.constant dense<0.000000e+00> : vector<16x32xf32>
    %19 = tpu.matmul %17, %6, %cst_13 {dimension_numbers = #tpu.dot_dimension_numbers<[1], [0], [0], [1], [0, 0, 1, 1], [], []>} : vector<16x128xf32>, vector<128x32xf32>, vector<16x32xf32> -> vector<16x32xf32>
    %20 = arith.addf %18, %19 : vector<16x32xf32>
    %c0_14 = arith.constant 0 : index
    %c0_15 = arith.constant 0 : index
    %21 = vector.load %arg8[%c0_14, %c0_15] : memref<16x32xf32, #tpu.memory_space<vmem>>, vector<16x32xf32>
    tpu.vector_store %arg8[%c0_14, %c0_15], %20 {strides = array<i32>} : memref<16x32xf32, #tpu.memory_space<vmem>>, vector<16x32xf32>,
    %c0_i32_16 = arith.constant 0 : i32
    %22 = arith.cmpi eq, %arg1, %c0_i32_16 : i32
    %23 = arith.extui %22 : i1 to i32
    %c0_i32_17 = arith.constant 0 : i32
    %24 = arith.cmpi ne, %23, %c0_i32_17 : i32
    scf.if %24 {
      %c0_18 = arith.constant 0 : index
      %c0_19 = arith.constant 0 : index
      %25 = vector.load %arg8[%c0_18, %c0_19] : memref<16x32xf32, #tpu.memory_space<vmem>>, vector<16x32xf32>
      %c0_20 = arith.constant 0 : index
      %c0_21 = arith.constant 0 : index
      %26 = vector.load %arg7[%c0_20, %c0_21] : memref<16x32xf32, #tpu.memory_space<vmem>>, vector<16x32xf32>
      tpu.vector_store %arg7[%c0_20, %c0_21], %25 {strides = array<i32>} : memref<16x32xf32, #tpu.memory_space<vmem>>, vector<16x32xf32>,
    } else {
    }
    return
  }
  func.func @transform_0(%arg0: i32, %arg1: i32) -> (i32, i32) {
    %c0_i32 = arith.constant 0 : i32
    %c0_i32_0 = arith.constant 0 : i32
    return %arg0, %c0_i32 : i32, i32
  }
  func.func @transform_1(%arg0: i32, %arg1: i32) -> (i32, i32) {
    %c0_i32 = arith.constant 0 : i32
    %c0_i32_0 = arith.constant 0 : i32
    return %c0_i32, %arg1 : i32, i32
  }
  func.func @transform_2(%arg0: i32, %arg1: i32) -> (i32, i32) {
    %c0_i32 = arith.constant 0 : i32
    %c0_i32_0 = arith.constant 0 : i32
    return %c0_i32, %arg1 : i32, i32
  }
  func.func @transform_3(%arg0: i32, %arg1: i32) -> (i32, i32) {
    %c0_i32 = arith.constant 0 : i32
    %c0_i32_0 = arith.constant 0 : i32
    return %arg1, %c0_i32 : i32, i32
  }
  func.func @transform_4(%arg0: i32, %arg1: i32) -> (i32, i32) {
    %c0_i32 = arith.constant 0 : i32
    %c0_i32_0 = arith.constant 0 : i32
    %c0_i32_1 = arith.constant 0 : i32
    return %c0_i32, %c0_i32_0 : i32, i32
  }
  func.func @transform_5(%arg0: i32, %arg1: i32) -> (i32, i32) {
    %c0_i32 = arith.constant 0 : i32
    %c0_i32_0 = arith.constant 0 : i32
    return %arg0, %c0_i32 : i32, i32
  }
}

</mosaic_0001>

<llo_original>
// kernel: mlp_forward.1
$region0: #{mlp_forward.1}
  #allocation0 [shape = 'u32[]', space=smem, size = 0x4, offset = 0x4, fixed_abs, tag = 'smem constant byte address 0x4 - core index']
  #allocation1 [shape = 'u32[144,128]{1,0:T(1,128)}', space=vmem, size = 0x12000, scoped, tag = 'internal scratch']
  #allocation2 [shape = 'f32[16,32]{1,0:T(8,128)}', space=vmem, size = 0x2000, scoped, tag = 'scratch operand']
  %s0 = inlined_call_operand.hbm [shape: f32[16,32], index: 0, kind: input, shape index: {}]
  %s1 = inlined_call_operand.hbm [shape: f32[32,128], index: 1, kind: input, shape index: {}]
  %s2 = inlined_call_operand.hbm [shape: f32[1,128], index: 2, kind: input, shape index: {}]
  %s3 = inlined_call_operand.hbm [shape: f32[128,32], index: 3, kind: input, shape index: {}]
  %s4 = inlined_call_operand.hbm [shape: f32[1,32], index: 4, kind: input, shape index: {}]
  %s5 = inlined_call_operand.hbm [shape: f32[16,32], index: 5, kind: output, shape index: {}]
  %s6 = sld [smem:[#allocation0]]
  $region58: #{mlp_forward.1} parent=0
    _
  %s8 = ssub.s32 1, %s6
  %s9 = scalar_select 0, %s8, %s6
  $region1: #{mlp_forward.1} parent=0
    #allocation3 [shape = 'u8[8192]{0}', space=vmem, size = 0x2000, scoped, tag = 'input window, operand 0, single buffered']
    #allocation4 [shape = 's32[1]{0}', space=sflag, size = 0x4, scoped, tag = 'scoped memory for mlp_forward.1']
    #allocation5 [shape = 's32[1]{0}', space=sflag, size = 0x4, scoped, tag = 'scoped memory for mlp_forward.1']
    #allocation6 [shape = 'u8[16384]{0}', space=vmem, size = 0x4000, scoped, tag = 'input window, operand 1, single buffered']
    #allocation7 [shape = 's32[1]{0}', space=sflag, size = 0x4, scoped, tag = 'scoped memory for mlp_forward.1']
    #allocation8 [shape = 'u8[512]{0}', space=vmem, size = 0x400, scoped, tag = 'input window, operand 2, single buffered']
    #allocation9 [shape = 'u8[65536]{0}', space=vmem, size = 0x10000, scoped, tag = 'input window, operand 3, single buffered']
    #allocation10 [shape = 's32[1]{0}', space=sflag, size = 0x4, scoped, tag = 'scoped memory for mlp_forward.1']
    #allocation11 [shape = 'u8[512]{0}', space=vmem, size = 0x400, scoped, tag = 'input window, operand 4, single buffered']
    #allocation12 [shape = 'u8[8192]{0}', space=vmem, size = 0x2000, scoped, tag = 'output window, operand 0, single buffered']
    %10 = vsyncpa [#allocation4], 0
    %11 = vsyncpa [#allocation7], 0
    %12 = vsyncpa [#allocation10], 0
    %13 = vsyncpa [#allocation5], 0
    // Predicated region
    $region2: #{mlp_forward.1} parent=1 // pred_check
      _
    $region3: #{mlp_forward.1} parent=1 // pred_check_branch
      %15 = sbr.rel (0) target = $region5
    $region4: #{mlp_forward.1} parent=1 // pred_region
      %s17 = ssub.s32 256, 256
      %18 = vsyncadd [#allocation4], %s17
      %s19 = sshll.u32 [#allocation3], 4
      %s20 = int_to_ptr.vmem [resolvable:$true] %s19
      %25 = dma.hbm_to_vmem [thread:$0]  %s0, 256, %s20, [#allocation4], 128, 128, 8
    $region5: #{mlp_forward.1} parent=1 // pred_fallthru
      _
    // Predicated region
    $region6: #{mlp_forward.1} parent=1 // pred_check
      _
    $region7: #{mlp_forward.1} parent=1 // pred_check_branch
      %27 = sbr.rel (0) target = $region9
    $region8: #{mlp_forward.1} parent=1 // pred_region
      %s29 = ssub.s32 512, 512
      %30 = vsyncadd [#allocation7], %s29
      %s31 = sshll.u32 [#allocation6], 4
      %s32 = int_to_ptr.vmem [resolvable:$true] %s31
      %37 = dma.hbm_to_vmem [thread:$0]  %s1, 512, %s32, [#allocation7], 128, 128, 8
    $region9: #{mlp_forward.1} parent=1 // pred_fallthru
      _
    // Predicated region
    $region10: #{mlp_forward.1} parent=1 // pred_check
      _
    $region11: #{mlp_forward.1} parent=1 // pred_check_branch
      %39 = sbr.rel (0) target = $region13
    $region12: #{mlp_forward.1} parent=1 // pred_region
      %s41 = ssub.s32 16, 16
      %42 = vsyncadd [#allocation7], %s41
      %s44 = sshll.u32 [#allocation8], 4
      %s45 = int_to_ptr.vmem [resolvable:$true] %s44
      %47 = dma.hbm_to_vmem [thread:$0]  %s2, 16, %s45, [#allocation7]
    $region13: #{mlp_forward.1} parent=1 // pred_fallthru
      _
    // Predicated region
    $region14: #{mlp_forward.1} parent=1 // pred_check
      _
    $region15: #{mlp_forward.1} parent=1 // pred_check_branch
      %49 = sbr.rel (0) target = $region17
    $region16: #{mlp_forward.1} parent=1 // pred_region
      %s51 = ssub.s32 2048, 2048
      %52 = vsyncadd [#allocation10], %s51
      %s53 = sshll.u32 [#allocation9], 4
      %s54 = int_to_ptr.vmem [resolvable:$true] %s53
      %59 = dma.hbm_to_vmem [thread:$0]  %s3, 2048, %s54, [#allocation10], 128, 128, 8
    $region17: #{mlp_forward.1} parent=1 // pred_fallthru
      _
    // Predicated region
    $region18: #{mlp_forward.1} parent=1 // pred_check
      _
    $region19: #{mlp_forward.1} parent=1 // pred_check_branch
      %61 = sbr.rel (0) target = $region21
    $region20: #{mlp_forward.1} parent=1 // pred_region
      %s63 = ssub.s32 16, 16
      %64 = vsyncadd [#allocation10], %s63
      %s66 = sshll.u32 [#allocation11], 4
      %s67 = int_to_ptr.vmem [resolvable:$true] %s66
      %69 = dma.hbm_to_vmem [thread:$0]  %s4, 16, %s67, [#allocation10]
    $region21: #{mlp_forward.1} parent=1 // pred_fallthru
      _
    // Predicated region
    $region22: #{mlp_forward.1} parent=1 // pred_check
      _
    $region23: #{mlp_forward.1} parent=1 // pred_check_branch
      %71 = sbr.rel (0) target = $region25
    $region24: #{mlp_forward.1} parent=1 // pred_region
      %72 = dma.done [#allocation4], 256
    $region25: #{mlp_forward.1} parent=1 // pred_fallthru
      _
    // Predicated region
    $region26: #{mlp_forward.1} parent=1 // pred_check
      _
    $region27: #{mlp_forward.1} parent=1 // pred_check_branch
      %74 = sbr.rel (0) target = $region29
    $region28: #{mlp_forward.1} parent=1 // pred_region
      %75 = dma.done [#allocation7], 512
    $region29: #{mlp_forward.1} parent=1 // pred_fallthru
      _
    // Predicated region
    $region30: #{mlp_forward.1} parent=1 // pred_check
      _
    $region31: #{mlp_forward.1} parent=1 // pred_check_branch
      %77 = sbr.rel (0) target = $region33
    $region32: #{mlp_forward.1} parent=1 // pred_region
      %78 = dma.done [#allocation7], 16
    $region33: #{mlp_forward.1} parent=1 // pred_fallthru
      _
    // Predicated region
    $region34: #{mlp_forward.1} parent=1 // pred_check
      _
    $region35: #{mlp_forward.1} parent=1 // pred_check_branch
      %80 = sbr.rel (0) target = $region37
    $region36: #{mlp_forward.1} parent=1 // pred_region
      %81 = dma.done [#allocation10], 2048
    $region37: #{mlp_forward.1} parent=1 // pred_fallthru
      _
    // Predicated region
    $region38: #{mlp_forward.1} parent=1 // pred_check
      _
    $region39: #{mlp_forward.1} parent=1 // pred_check_branch
      %83 = sbr.rel (0) target = $region41
    $region40: #{mlp_forward.1} parent=1 // pred_region
      %84 = dma.done [#allocation10], 16
    $region41: #{mlp_forward.1} parent=1 // pred_fallthru
      _
    %p85 = scmp.eq.s32.totalorder 0, 0
    // Predicated region
    $region42: #{mlp_forward.1} parent=1 // pred_check
      %p86 = pneg %p85
    $region43: #{mlp_forward.1} parent=1 // pred_check_branch
      %88 = sbr.rel (%p86) target = $region45
    $region44: #{mlp_forward.1} parent=1 // pred_region
      %v89 = vld [vmem:[#allocation11] sm:$0x1]
      %v91 = vlaneseq
      %v92 = vshrl.u32 %v91, 7
      %v93 = vsub.s32 0, %v92
      %v94 = vrot.slane %v89, %v93
      %vm96 = vcmask 261120
      %97 = vst.msk [vmem:[#allocation2] sm:$0xff] %vm96, %v94
      %98 = vst.msk [vmem:[#allocation2 + $0x8] sm:$0xff] %vm96, %v94
    $region45: #{mlp_forward.1} parent=1 // pred_fallthru
      _
    %v99 = vld [vmem:[#allocation3] sm:$0xff]
    %v100 = vld [vmem:[#allocation3 + $0x8] sm:$0xff]
    %v101 = vld [vmem:[#allocation6] sm:$0xff]
    %v102 = vld [vmem:[#allocation6 + $0x8] sm:$0xff]
    %v103 = vld [vmem:[#allocation6 + $0x10] sm:$0xff]
    %v104 = vld [vmem:[#allocation6 + $0x18] sm:$0xff]
    %v105 = vld [vmem:[#allocation8] sm:$0x1]
    %v106 = vld [vmem:[#allocation9] sm:$0xff]
    %v107 = vld [vmem:[#allocation9 + $0x8] sm:$0xff]
    %v108 = vld [vmem:[#allocation9 + $0x10] sm:$0xff]
    %v109 = vld [vmem:[#allocation9 + $0x18] sm:$0xff]
    %v110 = vld [vmem:[#allocation9 + $0x20] sm:$0xff]
    %v111 = vld [vmem:[#allocation9 + $0x28] sm:$0xff]
    %v112 = vld [vmem:[#allocation9 + $0x30] sm:$0xff]
    %v113 = vld [vmem:[#allocation9 + $0x38] sm:$0xff]
    %v114 = vld [vmem:[#allocation9 + $0x40] sm:$0xff]
    %v115 = vld [vmem:[#allocation9 + $0x48] sm:$0xff]
    %v116 = vld [vmem:[#allocation9 + $0x50] sm:$0xff]
    %v117 = vld [vmem:[#allocation9 + $0x58] sm:$0xff]
    %v118 = vld [vmem:[#allocation9 + $0x60] sm:$0xff]
    %v119 = vld [vmem:[#allocation9 + $0x68] sm:$0xff]
    %v120 = vld [vmem:[#allocation9 + $0x70] sm:$0xff]
    %v121 = vld [vmem:[#allocation9 + $0x78] sm:$0xff]
    %v123 = vlaneseq
    %v124 = vshrl.u32 %v123, 7
    %v125 = vsub.s32 0, %v124
    %v126 = vrot.slane %v105, %v125
    %vm128 = vcmask 261120
    %v130 = vsel %vm128, %v99, 0
    %v133 = vsel %vm128, %v100, 0
    %135 = vmatprep.subr.mxu0 0.0
    %136 = vmatpush1.msra.mxu0 %v101
    %137 = vmatprep.subr.mxu0 0.0
    %138 = vmatpush1.msra.mxu0 %v102
    %139 = vmatprep.subr.mxu0 0.0
    %140 = vmatpush1.msra.mxu0 %v103
    %141 = vmatprep.subr.mxu0 0.0
    %142 = vmatpush1.msra.mxu0 %v104
    %143 = vmatprep.subr.mxu0 0.0
    %144 = vmatpush1.msra.mxu0 0.0
    %145 = vmatprep.subr.mxu0 0.0
    %146 = vmatpush1.msra.mxu0 0.0
    %147 = vmatprep.subr.mxu0 0.0
    %148 = vmatpush1.msra.mxu0 0.0
    %149 = vmatprep.subr.mxu0 0.0
    %150 = vmatpush1.msra.mxu0 0.0
    %151 = vmatprep.subr.mxu0 0.0
    %152 = vmatpush1.msra.mxu0 0.0
    %153 = vmatprep.subr.mxu0 0.0
    %154 = vmatpush1.msra.mxu0 0.0
    %155 = vmatprep.subr.mxu0 0.0
    %156 = vmatpush1.msra.mxu0 0.0
    %157 = vmatprep.subr.mxu0 0.0
    %158 = vmatpush1.msra.mxu0 0.0
    %159 = vmatprep.subr.mxu0 0.0
    %160 = vmatpush1.msra.mxu0 0.0
    %161 = vmatprep.subr.mxu0 0.0
    %162 = vmatpush1.msra.mxu0 0.0
    %163 = vmatprep.subr.mxu0 0.0
    %164 = vmatpush1.msra.mxu0 0.0
    %165 = vmatprep.subr.mxu0 0.0
    %166 = vmatpush1.msra.mxu0 0.0
    %167 = vmatprep.subr.mxu0 0.0
    %168 = vmatpush1.msra.mxu0 0.0
    %169 = vmatprep.subr.mxu0 0.0
    %170 = vmatpush1.msra.mxu0 0.0
    %171 = vmatprep.subr.mxu0 0.0
    %172 = vmatpush1.msra.mxu0 0.0
    %173 = vmatprep.subr.mxu0 0.0
    %174 = vmatpush1.msra.mxu0 0.0
    %175 = vmatprep.subr.mxu0 0.0
    %176 = vmatpush1.msra.mxu0 0.0
    %177 = vmatprep.subr.mxu0 0.0
    %178 = vmatpush1.msra.mxu0 0.0
    %179 = vmatprep.subr.mxu0 0.0
    %180 = vmatpush1.msra.mxu0 0.0
    %181 = vmatprep.subr.mxu0 0.0
    %182 = vmatpush1.msra.mxu0 0.0
    %183 = vmatprep.subr.mxu0 0.0
    %184 = vmatpush1.msra.mxu0 0.0
    %185 = vmatprep.subr.mxu0 0.0
    %186 = vmatpush1.msra.mxu0 0.0
    %187 = vmatprep.subr.mxu0 0.0
    %188 = vmatpush1.msra.mxu0 0.0
    %189 = vmatprep.subr.mxu0 0.0
    %190 = vmatpush1.msra.mxu0 0.0
    %191 = vmatprep.subr.mxu0 0.0
    %192 = vmatpush1.msra.mxu0 0.0
    %193 = vmatprep.subr.mxu0 0.0
    %194 = vmatpush1.msra.mxu0 0.0
    %195 = vmatprep.subr.mxu0 0.0
    %196 = vmatpush1.msra.mxu0 0.0
    %197 = vmatprep.subr.mxu0 0.0
    %198 = vmatpush1.msra.mxu0 0.0
    %199 = vmatprep.mubr.f32.mxu0 0.0
    %200 = vmatmul.mubr.f32.gmra.mrb[0].mxu0 %v130
    %v201 = vpop.f32.mrb[0].mxu0
    %v202 = vadd.f32 %v126, %v201
    %v203 = vpop.f32.mrb[0].mxu0
    %204 = vmatprep.mubr.f32.mxu0 0.0
    %205 = vmatmul.mubr.f32.gmra.mrb[0].mxu0 %v133
    %v206 = vpop.f32.mrb[0].mxu0
    %v207 = vadd.f32 %v126, %v206
    %v208 = vpop.f32.mrb[0].mxu0
    %209 = vdwg.mxu0
    %v210 = vmul.f32 %v202, 0.5
    %v211 = vmul.f32 %v207, 0.5
    %v212 = vmul.f32 %v202, 0.70710677
    %v213 = vmul.f32 %v207, 0.70710677
    %v214 = verf.f32.pop %v212
    %v215 = verf.f32.pop %v213
    %v216 = vadd.f32 %v214, 1.0
    %v217 = vadd.f32 %v215, 1.0
    %v218 = vmul.f32 %v210, %v216
    %v219 = vmul.f32 %v211, %v217
    %v220 = vld [vmem:[#allocation2] sm:$0xff]
    %v221 = vld [vmem:[#allocation2 + $0x8] sm:$0xff]
    %222 = vmatprep.subr.mxu0 0.0
    %223 = vmatpush1.msra.mxu0 %v106
    %224 = vmatprep.subr.mxu0 0.0
    %225 = vmatpush1.msra.mxu0 %v107
    %226 = vmatprep.subr.mxu0 0.0
    %227 = vmatpush1.msra.mxu0 %v108
    %228 = vmatprep.subr.mxu0 0.0
    %229 = vmatpush1.msra.mxu0 %v109
    %230 = vmatprep.subr.mxu0 0.0
    %231 = vmatpush1.msra.mxu0 %v110
    %232 = vmatprep.subr.mxu0 0.0
    %233 = vmatpush1.msra.mxu0 %v111
    %234 = vmatprep.subr.mxu0 0.0
    %235 = vmatpush1.msra.mxu0 %v112
    %236 = vmatprep.subr.mxu0 0.0
    %237 = vmatpush1.msra.mxu0 %v113
    %238 = vmatprep.subr.mxu0 0.0
    %239 = vmatpush1.msra.mxu0 %v114
    %240 = vmatprep.subr.mxu0 0.0
    %241 = vmatpush1.msra.mxu0 %v115
    %242 = vmatprep.subr.mxu0 0.0
    %243 = vmatpush1.msra.mxu0 %v116
    %244 = vmatprep.subr.mxu0 0.0
    %245 = vmatpush1.msra.mxu0 %v117
    %246 = vmatprep.subr.mxu0 0.0
    %247 = vmatpush1.msra.mxu0 %v118
    %248 = vmatprep.subr.mxu0 0.0
    %249 = vmatpush1.msra.mxu0 %v119
    %250 = vmatprep.subr.mxu0 0.0
    %251 = vmatpush1.msra.mxu0 %v120
    %252 = vmatprep.subr.mxu0 0.0
    %253 = vmatpush1.msra.mxu0 %v121
    %254 = vmatprep.subr.mxu0 0.0
    %255 = vmatpush1.msra.mxu0 0.0
    %256 = vmatprep.subr.mxu0 0.0
    %257 = vmatpush1.msra.mxu0 0.0
    %258 = vmatprep.subr.mxu0 0.0
    %259 = vmatpush1.msra.mxu0 0.0
    %260 = vmatprep.subr.mxu0 0.0
    %261 = vmatpush1.msra.mxu0 0.0
    %262 = vmatprep.subr.mxu0 0.0
    %263 = vmatpush1.msra.mxu0 0.0
    %264 = vmatprep.subr.mxu0 0.0
    %265 = vmatpush1.msra.mxu0 0.0
    %266 = vmatprep.subr.mxu0 0.0
    %267 = vmatpush1.msra.mxu0 0.0
    %268 = vmatprep.subr.mxu0 0.0
    %269 = vmatpush1.msra.mxu0 0.0
    %270 = vmatprep.subr.mxu0 0.0
    %271 = vmatpush1.msra.mxu0 0.0
    %272 = vmatprep.subr.mxu0 0.0
    %273 = vmatpush1.msra.mxu0 0.0
    %274 = vmatprep.subr.mxu0 0.0
    %275 = vmatpush1.msra.mxu0 0.0
    %276 = vmatprep.subr.mxu0 0.0
    %277 = vmatpush1.msra.mxu0 0.0
    %278 = vmatprep.subr.mxu0 0.0
    %279 = vmatpush1.msra.mxu0 0.0
    %280 = vmatprep.subr.mxu0 0.0
    %281 = vmatpush1.msra.mxu0 0.0
    %282 = vmatprep.subr.mxu0 0.0
    %283 = vmatpush1.msra.mxu0 0.0
    %284 = vmatprep.subr.mxu0 0.0
    %285 = vmatpush1.msra.mxu0 0.0
    %286 = vmatprep.mubr.f32.mxu0 0.0
    %287 = vmatmul.mubr.f32.gmra.mrb[0].mxu0 %v218
    %v288 = vpop.f32.mrb[0].mxu0
    %v289 = vadd.f32 0.0, %v288
    %v290 = vpop.f32.mrb[0].mxu0
    %291 = vmatprep.mubr.f32.mxu0 0.0
    %292 = vmatmul.mubr.f32.gmra.mrb[0].mxu0 %v219
    %v293 = vpop.f32.mrb[0].mxu0
    %v294 = vadd.f32 0.0, %v293
    %v295 = vpop.f32.mrb[0].mxu0
    %296 = vdwg.mxu0
    %v297 = vadd.f32 %v220, %v289
    %v298 = vadd.f32 %v221, %v294
    %299 = vst.msk [vmem:[#allocation2] sm:$0xff] %vm128, %v297
    %300 = vst.msk [vmem:[#allocation2 + $0x8] sm:$0xff] %vm128, %v298
    // Predicated region
    $region46: #{mlp_forward.1} parent=1 // pred_check
      %p301 = pneg %p85
    $region47: #{mlp_forward.1} parent=1 // pred_check_branch
      %303 = sbr.rel (%p301) target = $region49
    $region48: #{mlp_forward.1} parent=1 // pred_region
      %v304 = vld [vmem:[#allocation2] sm:$0xff]
      %v305 = vld [vmem:[#allocation2 + $0x8] sm:$0xff]
      %306 = vst.msk [vmem:[#allocation12] sm:$0xff] %vm128, %v304
      %307 = vst.msk [vmem:[#allocation12 + $0x8] sm:$0xff] %vm128, %v305
    $region49: #{mlp_forward.1} parent=1 // pred_fallthru
      _
    // Predicated region
    $region50: #{mlp_forward.1} parent=1 // pred_check
      _
    $region51: #{mlp_forward.1} parent=1 // pred_check_branch
      %309 = sbr.rel (0) target = $region53
    $region52: #{mlp_forward.1} parent=1 // pred_region
      %s311 = ssub.s32 256, 256
      %312 = vsyncadd [#allocation5], %s311
      %s313 = sshll.u32 [#allocation12], 4
      %s314 = int_to_ptr.vmem [resolvable:$true] %s313
      %319 = dma.vmem_to_hbm [thread:$0]  %s314, 256, %s5, [#allocation5], 128, 128, 8
    $region53: #{mlp_forward.1} parent=1 // pred_fallthru
      _
    // Predicated region
    $region54: #{mlp_forward.1} parent=1 // pred_check
      _
    $region55: #{mlp_forward.1} parent=1 // pred_check_branch
      %321 = sbr.rel (0) target = $region57
    $region56: #{mlp_forward.1} parent=1 // pred_region
      %322 = dma.done [#allocation5], 256
    $region57: #{mlp_forward.1} parent=1 // pred_fallthru
      _
    %323 = vsyncpa [#allocation4], 1
    %324 = vsyncpa [#allocation7], 1
    %325 = vsyncpa [#allocation10], 1
    %326 = vsyncpa [#allocation5], 1

</llo_original>
